<compile_context>
chip_gen: v7x
topology: tpu7x:2x2x1
jax: 0.10.0
libtpu: 0.0.40
codegen_flags: <defaults>
</compile_context>

<pallas_src>
import functools

import jax
import jax.numpy as jnp
from jax.experimental import pallas as pl
from jax.experimental.pallas import tpu as pltpu


def _routing_kernel(u_ref, bias_ref, v_ref, *, iters, use_bias, j_caps, i_caps):
    # u_ref:    [TB, N, J*I]  lane index m = i*J + j
    # bias_ref: [N, J*I]      bias[j, n] replicated over i
    # v_ref:    [TB, N, J*I]  output (value constant over i within a lane group)
    u = u_ref[...].astype(jnp.float32)
    tb, n_len, ji = u.shape
    bias = bias_ref[...].astype(jnp.float32)

    inv_j = jnp.float32(1.0 / j_caps)
    pow2_i = (i_caps & (i_caps - 1)) == 0

    b_vec = None          # routing logits, flat [TB, J*I]
    v = None

    for it in range(iters):
        # --- coupling coefficients c = softmax_j(b) --------------------------
        if it == 0:
            # logits are identically zero -> softmax is exactly 1/J everywhere;
            # skip the max/exp/sum entirely on the first iteration.
            p = u * inv_j
        else:
            bc = b_vec.reshape(tb, i_caps, j_caps)            # compact [TB, I, J]
            mx = jnp.max(bc, axis=-1, keepdims=True)
            e = jnp.exp(bc - mx)
            denom = jnp.sum(e, axis=-1, keepdims=True)
            c = (e * pl.reciprocal(denom, approx=False)).reshape(tb, ji)
            p = u * c[:, None, :]                             # [TB, N, J*I]

        # --- s[b, j, n] = sum_i c[b, j, i] * u[b, j, i, n] --------------------
        if pow2_i:
            # Sign-agnostic rotate tree over residue classes mod J: afterwards
            # every lane m holds the sum over {m' : m' % J == m % J}, i.e. the
            # result is already broadcast over the child-capsule axis i.
            s2 = p.reshape(tb * n_len, ji)
            shift = j_caps
            while shift < ji:
                s2 = s2 + pltpu.roll(s2, shift=shift, axis=1)
                shift *= 2
            s = s2.reshape(tb, n_len, ji)
        else:
            # Generic fallback (non power-of-two I): explicit lane split.
            p4 = p.reshape(tb, n_len, i_caps, j_caps)
            s4 = jnp.sum(p4, axis=2, keepdims=True)
            s = jnp.broadcast_to(s4, p4.shape).reshape(tb, n_len, ji)

        # --- bias + reset mask (matches the PyTorch reference) ---------------
        if use_bias:
            s_b = s + bias[None]
            reset = jnp.sum(s, axis=1, keepdims=True) == 0.0   # fragile exact-0
            s_b = jnp.where(reset, 0.0, s_b)
        else:
            s_b = s

        # --- squash along the capsule-length axis (sublanes) -----------------
        sq = jnp.sum(s_b * s_b, axis=1, keepdims=True)         # [TB, 1, J*I]
        scale = sq * pl.reciprocal(1.0 + sq, approx=False) * jax.lax.rsqrt(sq + 1e-8)
        v = scale * s_b                                        # [TB, N, J*I]

        # --- agreement update of the routing logits ---------------------------
        if it + 1 < iters:
            upd = jnp.sum(u * v, axis=1)                       # [TB, J*I]
            b_vec = upd if b_vec is None else b_vec + upd

    v_ref[...] = v.astype(v_ref.dtype)


def _pick_batch_block(batch, n_len, ji, max_block_bytes=4 * 1024 * 1024):
    """Batch block size: fits a conservative VMEM budget, keeps >= 2 grid steps
    when B >= 2 (so both v7x TensorCores get blocks) and divides the batch."""
    bytes_per_row = 2 * 2 * n_len * ji * 4       # in + out, double-buffered, f32
    tb = max(1, min(batch, max_block_bytes // bytes_per_row))
    if batch >= 2:
        tb = max(1, min(tb, batch // 2))
    while batch % tb:
        tb -= 1
    return tb


def dynamic_routing(u_hat, bias, iters, use_bias=True):
    """u_hat: [B, J, I, N] float32, bias: [J, N] float32 -> v: [B, J, N]."""
    B, J, I, N = u_hat.shape
    JI = J * I

    # Lane-dense layout: capsule length n on sublanes, m = i*J + j on lanes.
    u_t = jnp.transpose(u_hat, (0, 3, 2, 1)).reshape(B, N, JI)
    bias_t = jnp.tile(jnp.transpose(bias), (1, I))             # [N, JI]

    tb = _pick_batch_block(B, N, JI)
    grid = (B // tb,)

    # Scoped-VMEM limit valid on every generation (v5e default is only 16 MiB,
    # v7x physical is 64 MiB); sized from actual per-step block usage.
    step_bytes = 2 * (2 * tb * N * JI + N * JI) * 4
    vmem_limit = int(min(32 * 1024 * 1024, max(4 * 1024 * 1024, 4 * step_bytes)))

    kernel = functools.partial(_routing_kernel, iters=iters, use_bias=use_bias,
                               j_caps=J, i_caps=I)

    out_t = pl.pallas_call(
        kernel,
        out_shape=jax.ShapeDtypeStruct((B, N, JI), u_hat.dtype),
        grid_spec=pltpu.PrefetchScalarGridSpec(
            num_scalar_prefetch=0,
            grid=grid,
            in_specs=[
                pl.BlockSpec((tb, N, JI), lambda b: (b, 0, 0)),
                pl.BlockSpec((N, JI), lambda b: (0, 0)),
            ],
            out_specs=pl.BlockSpec((tb, N, JI), lambda b: (b, 0, 0)),
        ),
        compiler_params=pltpu.CompilerParams(
            dimension_semantics=("parallel",),
            vmem_limit_bytes=vmem_limit,
        ),
    )(u_t, bias_t)

    # out_t[b, n, i*J + j] == v[b, j, n]; the i = 0 group (first J lanes)
    # carries one clean copy of the result.
    return jnp.transpose(out_t[:, :, :J], (0, 2, 1))


def _routing_reference(u_hat, bias, iters, use_bias=True):
    """Pure-JAX reference mirroring the PyTorch forward."""
    B, J, I, N = u_hat.shape
    b_vec = jnp.zeros((B, J, I), jnp.float32)
    v = None
    for it in range(iters):
        c = jax.nn.softmax(b_vec, axis=1)                      # [B, J, I]
        s = jnp.einsum("bji,bjin->bjn", c, u_hat)              # [B, J, N]
        if use_bias:
            s_b = s + bias[None]
            reset = (jnp.sum(s, axis=2, keepdims=True) == 0.0)
            s_b = jnp.where(reset, 0.0, s_b)
        else:
            s_b = s
        sq = jnp.sum(s_b * s_b, axis=2, keepdims=True)
        v = (sq / (1.0 + sq)) * s_b / jnp.sqrt(sq + 1e-8)
        if it < iters - 1:
            b_vec = b_vec + jnp.einsum("bjin,bjn->bji", u_hat, v)
    return v


if __name__ == "__main__":
    # Shapes consistent with the module's forward:
    # batch=2, parent caps j=8, child caps i=16, capsule length n=8.
    B, J, I, N = 2, 8, 16, 8
    ITERS = 3

    key = jax.random.PRNGKey(0)
    u_hat = jax.random.normal(key, (B, J, I, N), dtype=jnp.float32)
    # bias_routing=True: nn.Parameter(torch.zeros(j, n)).fill_(0.1)
    bias = jnp.full((J, N), 0.1, dtype=jnp.float32)

    v = dynamic_routing(u_hat, bias, ITERS, use_bias=True)
    v = jax.block_until_ready(v)

    v_ref = _routing_reference(u_hat, bias, ITERS, use_bias=True)
    assert v.shape == (B, J, N)
    # Slightly looser rtol than strict 1e-5: the lane-dense kernel accumulates
    # the contractions in a different (tree) order and uses rsqrt/reciprocal.
    assert jnp.allclose(v, v_ref, rtol=1e-4, atol=1e-5), "mismatch vs reference"

    print("KERNEL_OK")
</pallas_src>

<mosaic_0001>
module attributes {stable_mosaic.version = 11 : i64} {
  func.func @_routing_kernel(%arg0: i32, %arg1: memref<1x8x128xf32, #tpu.memory_space<vmem>>, %arg2: memref<8x128xf32, #tpu.memory_space<vmem>>, %arg3: memref<1x8x128xf32, #tpu.memory_space<vmem>>) attributes {dimension_semantics = [#tpu.dimension_semantics<parallel>], iteration_bounds = array<i64: 2>, scalar_prefetch = 0 : i64, scratch_operands = 0 : i64, tpu.core_type = #tpu.core_type<tc>, window_params = [{transform_indices = @transform_0, window_bounds = array<i64: 1, 8, 128>}, {pipeline_mode = #tpu.pipeline_mode<synchronous>, transform_indices = @transform_1, window_bounds = array<i64: 8, 128>}, {transform_indices = @transform_2, window_bounds = array<i64: 1, 8, 128>}]} {
    %c0 = arith.constant 0 : index
    %c0_0 = arith.constant 0 : index
    %c0_1 = arith.constant 0 : index
    %0 = vector.load %arg1[%c0, %c0_0, %c0_1] : memref<1x8x128xf32, #tpu.memory_space<vmem>>, vector<1x8x128xf32>
    %c0_2 = arith.constant 0 : index
    %c0_3 = arith.constant 0 : index
    %1 = vector.load %arg2[%c0_2, %c0_3] : memref<8x128xf32, #tpu.memory_space<vmem>>, vector<8x128xf32>
    %cst = arith.constant 1.250000e-01 : f32
    %2 = vector.broadcast %cst : f32 to vector<1x8x128xf32>
    %3 = arith.mulf %0, %2 : vector<1x8x128xf32>
    %4 = vector.shape_cast %3 : vector<1x8x128xf32> to vector<8x128xf32>
    %c8_i32 = arith.constant 8 : i32
    %5 = tpu.dynamic_rotate %4 by %c8_i32 dim 1 : vector<8x128xf32>, i32 -> vector<8x128xf32>
    %6 = arith.addf %4, %5 : vector<8x128xf32>
    %c16_i32 = arith.constant 16 : i32
    %7 = tpu.dynamic_rotate %6 by %c16_i32 dim 1 : vector<8x128xf32>, i32 -> vector<8x128xf32>
    %8 = arith.addf %6, %7 : vector<8x128xf32>
    %c32_i32 = arith.constant 32 : i32
    %9 = tpu.dynamic_rotate %8 by %c32_i32 dim 1 : vector<8x128xf32>, i32 -> vector<8x128xf32>
    %10 = arith.addf %8, %9 : vector<8x128xf32>
    %c64_i32 = arith.constant 64 : i32
    %11 = tpu.dynamic_rotate %10 by %c64_i32 dim 1 : vector<8x128xf32>, i32 -> vector<8x128xf32>
    %12 = arith.addf %10, %11 : vector<8x128xf32>
    %13 = vector.shape_cast %12 : vector<8x128xf32> to vector<1x8x128xf32>
    %14 = vector.shape_cast %1 : vector<8x128xf32> to vector<1x8x128xf32>
    %15 = arith.addf %13, %14 : vector<1x8x128xf32>
    %cst_4 = arith.constant dense<0.000000e+00> : vector<1x128xf32>
    %16 = vector.multi_reduction <add>, %13, %cst_4 [1] : vector<1x8x128xf32> to vector<1x128xf32>
    %17 = vector.shape_cast %16 : vector<1x128xf32> to vector<1x1x128xf32>
    %cst_5 = arith.constant 0.000000e+00 : f32
    %18 = vector.broadcast %cst_5 : f32 to vector<1x1x128xf32>
    %19 = arith.cmpf oeq, %17, %18 : vector<1x1x128xf32>
    %cst_6 = arith.constant 0.000000e+00 : f32
    %20 = vector.shape_cast %19 : vector<1x1x128xi1> to vector<1x1x128xi1>
    %21 = vector.broadcast %20 : vector<1x1x128xi1> to vector<1x8x128xi1>
    %22 = vector.broadcast %cst_6 : f32 to vector<1x8x128xf32>
    %23 = arith.select %21, %22, %15 : vector<1x8x128xi1>, vector<1x8x128xf32>
    %24 = arith.mulf %23, %23 : vector<1x8x128xf32>
    %cst_7 = arith.constant dense<0.000000e+00> : vector<1x128xf32>
    %25 = vector.multi_reduction <add>, %24, %cst_7 [1] : vector<1x8x128xf32> to vector<1x128xf32>
    %26 = vector.shape_cast %25 : vector<1x128xf32> to vector<1x1x128xf32>
    %cst_8 = arith.constant 1.000000e+00 : f32
    %27 = vector.broadcast %cst_8 : f32 to vector<1x1x128xf32>
    %28 = arith.addf %27, %26 : vector<1x1x128xf32>
    %29 = tpu.reciprocal %28 : vector<1x1x128xf32> -> vector<1x1x128xf32>
    %30 = arith.mulf %26, %29 : vector<1x1x128xf32>
    %cst_9 = arith.constant 9.99999993E-9 : f32
    %31 = vector.broadcast %cst_9 : f32 to vector<1x1x128xf32>
    %32 = arith.addf %26, %31 : vector<1x1x128xf32>
    %33 = math.rsqrt %32 : vector<1x1x128xf32>
    %34 = arith.mulf %30, %33 : vector<1x1x128xf32>
    %35 = vector.broadcast %34 : vector<1x1x128xf32> to vector<1x8x128xf32>
    %36 = arith.mulf %35, %23 : vector<1x8x128xf32>
    %37 = arith.mulf %0, %36 : vector<1x8x128xf32>
    %cst_10 = arith.constant dense<0.000000e+00> : vector<1x128xf32>
    %38 = vector.multi_reduction <add>, %37, %cst_10 [1] : vector<1x8x128xf32> to vector<1x128xf32>
    %39 = vector.shape_cast %38 : vector<1x128xf32> to vector<1x16x8xf32>
    %cst_11 = arith.constant dense<0xFF800000> : vector<1x16xf32>
    %40 = vector.multi_reduction <maximumf>, %39, %cst_11 [2] : vector<1x16x8xf32> to vector<1x16xf32>
    %41 = vector.shape_cast %40 : vector<1x16xf32> to vector<1x16x1xf32>
    %42 = vector.broadcast %41 : vector<1x16x1xf32> to vector<1x16x8xf32>
    %43 = arith.subf %39, %42 : vector<1x16x8xf32>
    %44 = math.exp %43 : vector<1x16x8xf32>
    %cst_12 = arith.constant dense<0.000000e+00> : vector<1x16xf32>
    %45 = vector.multi_reduction <add>, %44, %cst_12 [2] : vector<1x16x8xf32> to vector<1x16xf32>
    %46 = vector.shape_cast %45 : vector<1x16xf32> to vector<1x16x1xf32>
    %47 = tpu.reciprocal %46 : vector<1x16x1xf32> -> vector<1x16x1xf32>
    %48 = vector.broadcast %47 : vector<1x16x1xf32> to vector<1x16x8xf32>
    %49 = arith.mulf %44, %48 : vector<1x16x8xf32>
    %50 = vector.shape_cast %49 : vector<1x16x8xf32> to vector<1x128xf32>
    %51 = vector.shape_cast %50 : vector<1x128xf32> to vector<1x1x128xf32>
    %52 = vector.broadcast %51 : vector<1x1x128xf32> to vector<1x8x128xf32>
    %53 = arith.mulf %0, %52 : vector<1x8x128xf32>
    %54 = vector.shape_cast %53 : vector<1x8x128xf32> to vector<8x128xf32>
    %c8_i32_13 = arith.constant 8 : i32
    %55 = tpu.dynamic_rotate %54 by %c8_i32_13 dim 1 : vector<8x128xf32>, i32 -> vector<8x128xf32>
    %56 = arith.addf %54, %55 : vector<8x128xf32>
    %c16_i32_14 = arith.constant 16 : i32
    %57 = tpu.dynamic_rotate %56 by %c16_i32_14 dim 1 : vector<8x128xf32>, i32 -> vector<8x128xf32>
    %58 = arith.addf %56, %57 : vector<8x128xf32>
    %c32_i32_15 = arith.constant 32 : i32
    %59 = tpu.dynamic_rotate %58 by %c32_i32_15 dim 1 : vector<8x128xf32>, i32 -> vector<8x128xf32>
    %60 = arith.addf %58, %59 : vector<8x128xf32>
    %c64_i32_16 = arith.constant 64 : i32
    %61 = tpu.dynamic_rotate %60 by %c64_i32_16 dim 1 : vector<8x128xf32>, i32 -> vector<8x128xf32>
    %62 = arith.addf %60, %61 : vector<8x128xf32>
    %63 = vector.shape_cast %62 : vector<8x128xf32> to vector<1x8x128xf32>
    %64 = vector.shape_cast %1 : vector<8x128xf32> to vector<1x8x128xf32>
    %65 = arith.addf %63, %64 : vector<1x8x128xf32>
    %cst_17 = arith.constant dense<0.000000e+00> : vector<1x128xf32>
    %66 = vector.multi_reduction <add>, %63, %cst_17 [1] : vector<1x8x128xf32> to vector<1x128xf32>
    %67 = vector.shape_cast %66 : vector<1x128xf32> to vector<1x1x128xf32>
    %cst_18 = arith.constant 0.000000e+00 : f32
    %68 = vector.broadcast %cst_18 : f32 to vector<1x1x128xf32>
    %69 = arith.cmpf oeq, %67, %68 : vector<1x1x128xf32>
    %cst_19 = arith.constant 0.000000e+00 : f32
    %70 = vector.shape_cast %69 : vector<1x1x128xi1> to vector<1x1x128xi1>
    %71 = vector.broadcast %70 : vector<1x1x128xi1> to vector<1x8x128xi1>
    %72 = vector.broadcast %cst_19 : f32 to vector<1x8x128xf32>
    %73 = arith.select %71, %72, %65 : vector<1x8x128xi1>, vector<1x8x128xf32>
    %74 = arith.mulf %73, %73 : vector<1x8x128xf32>
    %cst_20 = arith.constant dense<0.000000e+00> : vector<1x128xf32>
    %75 = vector.multi_reduction <add>, %74, %cst_20 [1] : vector<1x8x128xf32> to vector<1x128xf32>
    %76 = vector.shape_cast %75 : vector<1x128xf32> to vector<1x1x128xf32>
    %cst_21 = arith.constant 1.000000e+00 : f32
    %77 = vector.broadcast %cst_21 : f32 to vector<1x1x128xf32>
    %78 = arith.addf %77, %76 : vector<1x1x128xf32>
    %79 = tpu.reciprocal %78 : vector<1x1x128xf32> -> vector<1x1x128xf32>
    %80 = arith.mulf %76, %79 : vector<1x1x128xf32>
    %cst_22 = arith.constant 9.99999993E-9 : f32
    %81 = vector.broadcast %cst_22 : f32 to vector<1x1x128xf32>
    %82 = arith.addf %76, %81 : vector<1x1x128xf32>
    %83 = math.rsqrt %82 : vector<1x1x128xf32>
    %84 = arith.mulf %80, %83 : vector<1x1x128xf32>
    %85 = vector.broadcast %84 : vector<1x1x128xf32> to vector<1x8x128xf32>
    %86 = arith.mulf %85, %73 : vector<1x8x128xf32>
    %87 = arith.mulf %0, %86 : vector<1x8x128xf32>
    %cst_23 = arith.constant dense<0.000000e+00> : vector<1x128xf32>
    %88 = vector.multi_reduction <add>, %87, %cst_23 [1] : vector<1x8x128xf32> to vector<1x128xf32>
    %89 = arith.addf %38, %88 : vector<1x128xf32>
    %90 = vector.shape_cast %89 : vector<1x128xf32> to vector<1x16x8xf32>
    %cst_24 = arith.constant dense<0xFF800000> : vector<1x16xf32>
    %91 = vector.multi_reduction <maximumf>, %90, %cst_24 [2] : vector<1x16x8xf32> to vector<1x16xf32>
    %92 = vector.shape_cast %91 : vector<1x16xf32> to vector<1x16x1xf32>
    %93 = vector.broadcast %92 : vector<1x16x1xf32> to vector<1x16x8xf32>
    %94 = arith.subf %90, %93 : vector<1x16x8xf32>
    %95 = math.exp %94 : vector<1x16x8xf32>
    %cst_25 = arith.constant dense<0.000000e+00> : vector<1x16xf32>
    %96 = vector.multi_reduction <add>, %95, %cst_25 [2] : vector<1x16x8xf32> to vector<1x16xf32>
    %97 = vector.shape_cast %96 : vector<1x16xf32> to vector<1x16x1xf32>
    %98 = tpu.reciprocal %97 : vector<1x16x1xf32> -> vector<1x16x1xf32>
    %99 = vector.broadcast %98 : vector<1x16x1xf32> to vector<1x16x8xf32>
    %100 = arith.mulf %95, %99 : vector<1x16x8xf32>
    %101 = vector.shape_cast %100 : vector<1x16x8xf32> to vector<1x128xf32>
    %102 = vector.shape_cast %101 : vector<1x128xf32> to vector<1x1x128xf32>
    %103 = vector.broadcast %102 : vector<1x1x128xf32> to vector<1x8x128xf32>
    %104 = arith.mulf %0, %103 : vector<1x8x128xf32>
    %105 = vector.shape_cast %104 : vector<1x8x128xf32> to vector<8x128xf32>
    %c8_i32_26 = arith.constant 8 : i32
    %106 = tpu.dynamic_rotate %105 by %c8_i32_26 dim 1 : vector<8x128xf32>, i32 -> vector<8x128xf32>
    %107 = arith.addf %105, %106 : vector<8x128xf32>
    %c16_i32_27 = arith.constant 16 : i32
    %108 = tpu.dynamic_rotate %107 by %c16_i32_27 dim 1 : vector<8x128xf32>, i32 -> vector<8x128xf32>
    %109 = arith.addf %107, %108 : vector<8x128xf32>
    %c32_i32_28 = arith.constant 32 : i32
    %110 = tpu.dynamic_rotate %109 by %c32_i32_28 dim 1 : vector<8x128xf32>, i32 -> vector<8x128xf32>
    %111 = arith.addf %109, %110 : vector<8x128xf32>
    %c64_i32_29 = arith.constant 64 : i32
    %112 = tpu.dynamic_rotate %111 by %c64_i32_29 dim 1 : vector<8x128xf32>, i32 -> vector<8x128xf32>
    %113 = arith.addf %111, %112 : vector<8x128xf32>
    %114 = vector.shape_cast %113 : vector<8x128xf32> to vector<1x8x128xf32>
    %115 = vector.shape_cast %1 : vector<8x128xf32> to vector<1x8x128xf32>
    %116 = arith.addf %114, %115 : vector<1x8x128xf32>
    %cst_30 = arith.constant dense<0.000000e+00> : vector<1x128xf32>
    %117 = vector.multi_reduction <add>, %114, %cst_30 [1] : vector<1x8x128xf32> to vector<1x128xf32>
    %118 = vector.shape_cast %117 : vector<1x128xf32> to vector<1x1x128xf32>
    %cst_31 = arith.constant 0.000000e+00 : f32
    %119 = vector.broadcast %cst_31 : f32 to vector<1x1x128xf32>
    %120 = arith.cmpf oeq, %118, %119 : vector<1x1x128xf32>
    %cst_32 = arith.constant 0.000000e+00 : f32
    %121 = vector.shape_cast %120 : vector<1x1x128xi1> to vector<1x1x128xi1>
    %122 = vector.broadcast %121 : vector<1x1x128xi1> to vector<1x8x128xi1>
    %123 = vector.broadcast %cst_32 : f32 to vector<1x8x128xf32>
    %124 = arith.select %122, %123, %116 : vector<1x8x128xi1>, vector<1x8x128xf32>
    %125 = arith.mulf %124, %124 : vector<1x8x128xf32>
    %cst_33 = arith.constant dense<0.000000e+00> : vector<1x128xf32>
    %126 = vector.multi_reduction <add>, %125, %cst_33 [1] : vector<1x8x128xf32> to vector<1x128xf32>
    %127 = vector.shape_cast %126 : vector<1x128xf32> to vector<1x1x128xf32>
    %cst_34 = arith.constant 1.000000e+00 : f32
    %128 = vector.broadcast %cst_34 : f32 to vector<1x1x128xf32>
    %129 = arith.addf %128, %127 : vector<1x1x128xf32>
    %130 = tpu.reciprocal %129 : vector<1x1x128xf32> -> vector<1x1x128xf32>
    %131 = arith.mulf %127, %130 : vector<1x1x128xf32>
    %cst_35 = arith.constant 9.99999993E-9 : f32
    %132 = vector.broadcast %cst_35 : f32 to vector<1x1x128xf32>
    %133 = arith.addf %127, %132 : vector<1x1x128xf32>
    %134 = math.rsqrt %133 : vector<1x1x128xf32>
    %135 = arith.mulf %131, %134 : vector<1x1x128xf32>
    %136 = vector.broadcast %135 : vector<1x1x128xf32> to vector<1x8x128xf32>
    %137 = arith.mulf %136, %124 : vector<1x8x128xf32>
    %c0_36 = arith.constant 0 : index
    %c0_37 = arith.constant 0 : index
    %c0_38 = arith.constant 0 : index
    %138 = vector.load %arg3[%c0_36, %c0_37, %c0_38] : memref<1x8x128xf32, #tpu.memory_space<vmem>>, vector<1x8x128xf32>
    tpu.vector_store %arg3[%c0_36, %c0_37, %c0_38], %137 {strides = array<i32>} : memref<1x8x128xf32, #tpu.memory_space<vmem>>, vector<1x8x128xf32>,
    return
  }
  func.func @transform_0(%arg0: i32) -> (i32, i32, i32) {
    %c0_i32 = arith.constant 0 : i32
    %c0_i32_0 = arith.constant 0 : i32
    %c0_i32_1 = arith.constant 0 : i32
    return %arg0, %c0_i32, %c0_i32_0 : i32, i32, i32
  }
  func.func @transform_1(%arg0: i32) -> (i32, i32) {
    %c0_i32 = arith.constant 0 : i32
    %c0_i32_0 = arith.constant 0 : i32
    %c0_i32_1 = arith.constant 0 : i32
    return %c0_i32, %c0_i32_0 : i32, i32
  }
  func.func @transform_2(%arg0: i32) -> (i32, i32, i32) {
    %c0_i32 = arith.constant 0 : i32
    %c0_i32_0 = arith.constant 0 : i32
    %c0_i32_1 = arith.constant 0 : i32
    return %arg0, %c0_i32, %c0_i32_0 : i32, i32, i32
  }
}

</mosaic_0001>

<llo_original>
// kernel: tpu_custom_call.1
$region0: #{tpu_custom_call.1}
  #allocation0 [shape = 'u32[]', space=smem, size = 0x4, offset = 0x4, fixed_abs, tag = 'smem constant byte address 0x4 - core index']
  #allocation1 [shape = 'u32[144,128]{1,0:T(1,128)}', space=vmem, size = 0x12000, scoped, tag = 'internal scratch']
  %s0 = inlined_call_operand.hbm [shape: f32[2,8,128], index: 0, kind: input, shape index: {}]
  %s1 = inlined_call_operand.hbm [shape: f32[8,128], index: 1, kind: input, shape index: {}]
  %s2 = inlined_call_operand.hbm [shape: f32[2,8,128], index: 2, kind: output, shape index: {}]
  %s3 = sld [smem:[#allocation0]]
  $region49: #{tpu_custom_call.1} parent=0
    _
  %s5 = ssub.s32 1, %s3
  %s6 = scalar_select 0, %s5, %s3
  $region1: #{tpu_custom_call.1} parent=0
    #allocation2 [shape = 'u8[8192]{0}', space=vmem, size = 0x2000, scoped, tag = 'input window, operand 0']
    #allocation3 [shape = 's32[2]{0}', space=sflag, size = 0x8, scoped, tag = 'scoped memory for tpu_custom_call.1']
    #allocation4 [shape = 's32[2]{0}', space=sflag, size = 0x8, scoped, tag = 'scoped memory for tpu_custom_call.1']
    #allocation5 [shape = 'u8[4096]{0}', space=vmem, size = 0x1000, scoped, tag = 'input window, operand 1, single buffered']
    #allocation6 [shape = 's32[1]{0}', space=sflag, size = 0x4, scoped, tag = 'scoped memory for tpu_custom_call.1']
    #allocation7 [shape = 'u8[8192]{0}', space=vmem, size = 0x2000, scoped, tag = 'output window, operand 0']
    %7 = vsyncpa [#allocation3], 0
    %s8 = scalar_lea.sflag [#allocation3], 1
    %9 = vsyncpa %s8, 0
    %10 = vsyncpa [#allocation6], 0
    %11 = vsyncpa [#allocation4], 0
    %s12 = scalar_lea.sflag [#allocation4], 1
    %13 = vsyncpa %s12, 0
    loop: start=0, step=1, limit=4
    $region2: #{tpu_custom_call.1} parent=1 // loop_pre_header
      _
    $region3: #{tpu_custom_call.1} parent=1 // loop_header
      %s15 = sphi 0, %s19
      %p16 = scmp.ge.s32.totalorder %s15, 4
      %s25 = sphi 0, %s27
      %s28 = sphi 0, %s25
      %s29 = sphi 0, %s28
      %s45 = sphi 0, %s29
      %s49 = sphi 0, %s49
      %s51 = sphi 0, %s49
      %s52 = sphi 0, %s51
      %s66 = sphi 0, %s52
      %s72 = sphi 0, %s74
      %s75 = sphi 0, %s72
      %s76 = sphi 0, %s75
      %s92 = sphi 0, %s76
    $region4: #{tpu_custom_call.1} parent=1 // loop_header_branch
      %18 = sbr.rel (%p16) target = $region8
    $region5: #{tpu_custom_call.1} parent=1 // loop_body
      %s20 = ssub.s32 %s15, 1
      %s21 = ssub.s32 %s15, 2
      %s22 = sadd.s32 %s15, 1
      %s23 = ssub.s32 %s15, %s22
      %p24 = scmp.eq.s32.totalorder %s23, 0
      %s26 = sadd.s32 %s25, 1
      %s27 = scalar_select %p24, %s25, %s26
      %p30 = pneg %p24
      %p31 = scmp.eq.s32.totalorder %s15, 1
      %p32 = por %p30, %p31
      %p33 = scmp.ne.s32.totalorder %s25, %s28
      %p34 = scmp.eq.s32.totalorder %s15, 0
      %p35 = por %p33, %p34
      %p36 = scmp.ne.s32.totalorder %s25, %s28
      %p37 = scmp.eq.s32.totalorder %s20, 1
      %p38 = por %p36, %p37
      %p39 = scmp.ne.s32.totalorder %s28, %s29
      %p40 = scmp.eq.s32.totalorder %s20, 0
      %p41 = por %p39, %p40
      %p42 = scmp.ne.s32.totalorder %s28, %s29
      %p43 = scmp.eq.s32.totalorder %s21, 1
      %p44 = por %p42, %p43
      %p46 = scmp.ne.s32.totalorder %s29, %s45
      %p47 = scmp.eq.s32.totalorder %s21, 0
      %p48 = por %p46, %p47
      %s50 = sadd.s32 %s49, 1
      %p53 = scmp.eq.s32.totalorder %s15, 1
      %p54 = scmp.ne.s32.totalorder %s49, %s51
      %p55 = scmp.eq.s32.totalorder %s15, 0
      %p56 = por %p54, %p55
      %p57 = scmp.ne.s32.totalorder %s49, %s51
      %p58 = scmp.eq.s32.totalorder %s20, 1
      %p59 = por %p57, %p58
      %p60 = scmp.ne.s32.totalorder %s51, %s52
      %p61 = scmp.eq.s32.totalorder %s20, 0
      %p62 = por %p60, %p61
      %p63 = scmp.ne.s32.totalorder %s51, %s52
      %p64 = scmp.eq.s32.totalorder %s21, 1
      %p65 = por %p63, %p64
      %p67 = scmp.ne.s32.totalorder %s52, %s66
      %p68 = scmp.eq.s32.totalorder %s21, 0
      %p69 = por %p67, %p68
      %s70 = ssub.s32 %s15, %s22
      %p71 = scmp.eq.s32.totalorder %s70, 0
      %s73 = sadd.s32 %s72, 1
      %s74 = scalar_select %p71, %s72, %s73
      %p77 = pneg %p71
      %p78 = scmp.eq.s32.totalorder %s15, 1
      %p79 = por %p77, %p78
      %p80 = scmp.ne.s32.totalorder %s72, %s75
      %p81 = scmp.eq.s32.totalorder %s15, 0
      %p82 = por %p80, %p81
      %p83 = scmp.ne.s32.totalorder %s72, %s75
      %p84 = scmp.eq.s32.totalorder %s20, 1
      %p85 = por %p83, %p84
      %p86 = scmp.ne.s32.totalorder %s75, %s76
      %p87 = scmp.eq.s32.totalorder %s20, 0
      %p88 = por %p86, %p87
      %p89 = scmp.ne.s32.totalorder %s75, %s76
      %p90 = scmp.eq.s32.totalorder %s21, 1
      %p91 = por %p89, %p90
      %p93 = scmp.ne.s32.totalorder %s76, %s92
      %p94 = scmp.eq.s32.totalorder %s21, 0
      %p95 = por %p93, %p94
      %p96 = scmp.le.s32.totalorder 1, %s15
      %p97 = scmp.lt.s32.totalorder %s15, 3
      %p98 = pnand %p96, %p97
      %p99 = pneg %p98
      // Predicated region
      $region9: #{tpu_custom_call.1} parent=5 // pred_check
        _
      $region10: #{tpu_custom_call.1} parent=5 // pred_check_branch
        %101 = sbr.rel (%p98) target = $region12
      $region11: #{tpu_custom_call.1} parent=5 // pred_region
        %s102 = ssub.s32 %s15, 1
        // Predicated region
        $region13: #{tpu_custom_call.1} parent=11 // pred_check
          %p103 = pneg %p62
        $region14: #{tpu_custom_call.1} parent=11 // pred_check_branch
          %105 = sbr.rel (%p103) target = $region16
        $region15: #{tpu_custom_call.1} parent=11 // pred_region
          %s107 = ssub.s32 128, 128
          %108 = vsyncadd [#allocation6], %s107
          %s110 = sshll.u32 [#allocation5], 4
          %s111 = int_to_ptr.vmem [resolvable:$true] %s110
          %113 = dma.hbm_to_vmem [thread:$0]  %s1, 128, %s111, [#allocation6]
        $region16: #{tpu_custom_call.1} parent=11 // pred_fallthru
          _
      $region12: #{tpu_custom_call.1} parent=5 // pred_fallthru
        _
      %p114 = scmp.lt.s32.totalorder %s15, 2
      // Predicated region
      $region17: #{tpu_custom_call.1} parent=5 // pred_check
        %p115 = pneg %p114
      $region18: #{tpu_custom_call.1} parent=5 // pred_check_branch
        %117 = sbr.rel (%p115) target = $region20
      $region19: #{tpu_custom_call.1} parent=5 // pred_region
        // Predicated region
        $region21: #{tpu_custom_call.1} parent=19 // pred_check
          %p118 = pneg %p35
        $region22: #{tpu_custom_call.1} parent=19 // pred_check_branch
          %120 = sbr.rel (%p118) target = $region24
        $region23: #{tpu_custom_call.1} parent=19 // pred_region
          %s121 = sand.u32 %s25, 1
          %s122 = scalar_lea.sflag [#allocation3], %s121
          %s123 = sand.u32 %s25, 1
          %s124 = smul.addr %s123, 8
          %s125 = scalar_lea.vmem [#allocation2], %s124
          %s127 = ssub.s32 128, 128
          %128 = vsyncadd %s122, %s127
          %s129 = smul.addr %s15, 128
          %s130 = scalar_lea.hbm %s0, %s129
          %s132 = sshll.u32 %s125, 4
          %s133 = int_to_ptr.vmem [resolvable:$true] %s132
          %135 = dma.hbm_to_vmem [thread:$0]  %s130, 128, %s133, %s122
        $region24: #{tpu_custom_call.1} parent=19 // pred_fallthru
          _
      $region20: #{tpu_custom_call.1} parent=5 // pred_fallthru
        _
      %p136 = scmp.le.s32.totalorder 1, %s15
      %p137 = scmp.lt.s32.totalorder %s15, 3
      %p138 = pnand %p136, %p137
      %p139 = pneg %p138
      // Predicated region
      $region25: #{tpu_custom_call.1} parent=5 // pred_check
        _
      $region26: #{tpu_custom_call.1} parent=5 // pred_check_branch
        %141 = sbr.rel (%p138) target = $region28
      $region27: #{tpu_custom_call.1} parent=5 // pred_region
        %s142 = ssub.s32 %s15, 1
        %s143 = sand.u32 %s28, 1
        %s144 = scalar_lea.sflag [#allocation3], %s143
        %s145 = sand.u32 %s28, 1
        %s146 = smul.addr %s145, 8
        %s147 = scalar_lea.vmem [#allocation2], %s146
        // Predicated region
        $region29: #{tpu_custom_call.1} parent=27 // pred_check
          %p148 = pneg %p41
        $region30: #{tpu_custom_call.1} parent=27 // pred_check_branch
          %150 = sbr.rel (%p148) target = $region32
        $region31: #{tpu_custom_call.1} parent=27 // pred_region
          %151 = dma.done %s144, 128
        $region32: #{tpu_custom_call.1} parent=27 // pred_fallthru
          _
        // Predicated region
        $region33: #{tpu_custom_call.1} parent=27 // pred_check
          %p152 = pneg %p62
        $region34: #{tpu_custom_call.1} parent=27 // pred_check_branch
          %154 = sbr.rel (%p152) target = $region36
        $region35: #{tpu_custom_call.1} parent=27 // pred_region
          %155 = dma.done [#allocation6], 128
        $region36: #{tpu_custom_call.1} parent=27 // pred_fallthru
          _
        %s156 = sand.u32 %s28, 1
        %s157 = scalar_lea.sflag [#allocation3], %s156
        %s158 = sand.u32 %s28, 1
        %s159 = smul.addr %s158, 8
        %s160 = scalar_lea.vmem [#allocation2], %s159
        %p161 = pneg %p41
        %p162 = pneg %p38
        %p163 = pneg %p62
        %p164 = pneg %p59
        %p165 = pneg %p88
        %p166 = pneg %p85
        %s167 = sand.u32 %s75, 1
        %s168 = scalar_lea.sflag [#allocation4], %s167
        %s169 = sand.u32 %s75, 1
        %s170 = smul.addr %s169, 8
        %s171 = scalar_lea.vmem [#allocation7], %s170
        %v172 = vld [vmem:[%s147] sm:$0xff]
        %v173 = vld [vmem:[#allocation5] sm:$0xff]
        %v174 = vmul.f32 %v172, 0.125
        %175 = vrot.lane.b32.xlu0 %v174, 8
        %v176 = vpop.permute.xlu0 %175
        %v177 = vadd.f32 %v174, %v176
        %178 = vrot.lane.b32.xlu0 %v177, 16
        %v179 = vpop.permute.xlu0 %178
        %v180 = vadd.f32 %v177, %v179
        %181 = vrot.lane.b32.xlu0 %v180, 32
        %v182 = vpop.permute.xlu0 %181
        %v183 = vadd.f32 %v180, %v182
        %184 = vrot.lane.b32.xlu0 %v183, 64
        %v185 = vpop.permute.xlu0 %184
        %v186 = vadd.f32 %v183, %v185
        %v187 = vadd.f32 %v186, %v173
        %v188 = vrot.slane %v186, 4
        %v189 = vadd.f32 %v186, %v188
        %v190 = vrot.slane %v189, 2
        %v191 = vadd.f32 %v189, %v190
        %v192 = vrot.slane %v191, 1
        %v193 = vadd.f32 %v191, %v192
        %vm194 = vcmp.eq.f32.partialorder %v193, 0.0
        %v195 = vsel %vm194, 1, 0
        %vm196 = vcmp.eq.s32.totalorder %v195, 1
        %v197 = vsel %vm196, 0.0, %v187
        %v198 = vmul.f32 %v197, %v197
        %v199 = vrot.slane %v198, 4
        %v200 = vadd.f32 %v198, %v199
        %v201 = vrot.slane %v200, 2
        %v202 = vadd.f32 %v200, %v201
        %v203 = vrot.slane %v202, 1
        %v204 = vadd.f32 %v202, %v203
        %v205 = vadd.f32 %v204, 1.0
        %v206 = vrcp.pop %v205
        %v207 = vmul.f32 %v204, %v206
        %v208 = vadd.f32 %v204, 1e-08
        %v209 = vrsqrt.pop %v208
        %v210 = vmul.f32 %v207, %v209
        %v211 = vmul.f32 %v210, %v197
        %v212 = vmul.f32 %v172, %v211
        %v213 = vrot.slane %v212, 4
        %v214 = vadd.f32 %v212, %v213
        %v215 = vrot.slane %v214, 2
        %v216 = vadd.f32 %v214, %v215
        %v217 = vrot.slane %v216, 1
        %v218 = vadd.f32 %v216, %v217
        %220 = vrot.lane.b32.xlu0 %v218, 120
        %v221 = vpop.permute.xlu0 %220
        %223 = vrot.lane.b32.xlu0 %v218, 112
        %v224 = vpop.permute.xlu0 %223
        %226 = vrot.lane.b32.xlu0 %v218, 104
        %v227 = vpop.permute.xlu0 %226
        %229 = vrot.lane.b32.xlu0 %v218, 96
        %v230 = vpop.permute.xlu0 %229
        %232 = vrot.lane.b32.xlu0 %v218, 88
        %v233 = vpop.permute.xlu0 %232
        %235 = vrot.lane.b32.xlu0 %v218, 80
        %v236 = vpop.permute.xlu0 %235
        %238 = vrot.lane.b32.xlu0 %v218, 72
        %v239 = vpop.permute.xlu0 %238
        %241 = vrot.lane.b32.xlu0 %v218, 64
        %v242 = vpop.permute.xlu0 %241
        %244 = vrot.lane.b32.xlu0 %v218, 56
        %v245 = vpop.permute.xlu0 %244
        %247 = vrot.lane.b32.xlu0 %v218, 48
        %v248 = vpop.permute.xlu0 %247
        %250 = vrot.lane.b32.xlu0 %v218, 40
        %v251 = vpop.permute.xlu0 %250
        %253 = vrot.lane.b32.xlu0 %v218, 32
        %v254 = vpop.permute.xlu0 %253
        %256 = vrot.lane.b32.xlu0 %v218, 24
        %v257 = vpop.permute.xlu0 %256
        %259 = vrot.lane.b32.xlu0 %v218, 16
        %v260 = vpop.permute.xlu0 %259
        %262 = vrot.lane.b32.xlu0 %v218, 8
        %v263 = vpop.permute.xlu0 %262
        %v265 = vcombine.low %v218, %v224
        %v267 = vunpack.c.l.s4 1983009808
        %v268 = vunpack.c.0.s8 %v267
        %v269 = vlaneseq
        %v270 = vshrl.u32 %v269, 7
        %v271 = vsub.s32 %v268, %v270
        %v272 = vrot.slane %v265, %v271
        %v273 = vcombine.low %v221, %v227
        %v275 = vunpack.c.l.s4 1983009808
        %v276 = vunpack.c.0.s8 %v275
        %v277 = vlaneseq
        %v278 = vshrl.u32 %v277, 7
        %v279 = vsub.s32 %v276, %v278
        %v280 = vrot.slane %v273, %v279
        %v281 = vcombine.low %v230, %v236
        %v283 = vunpack.c.l.s4 1983009808
        %v284 = vunpack.c.0.s8 %v283
        %v285 = vlaneseq
        %v286 = vshrl.u32 %v285, 7
        %v287 = vsub.s32 %v284, %v286
        %v288 = vrot.slane %v281, %v287
        %v289 = vcombine.low %v233, %v239
        %v291 = vunpack.c.l.s4 1983009808
        %v292 = vunpack.c.0.s8 %v291
        %v293 = vlaneseq
        %v294 = vshrl.u32 %v293, 7
        %v295 = vsub.s32 %v292, %v294
        %v296 = vrot.slane %v289, %v295
        %v297 = vcombine.low %v272, %v280
        %v299 = vunpack.c.l.s4 1934713408
        %v300 = vunpack.c.0.s8 %v299
        %v301 = vlaneseq
        %v302 = vshrl.u32 %v301, 7
        %v303 = vsub.s32 %v300, %v302
        %v304 = vrot.slane %v297, %v303
        %v305 = vcombine.low %v288, %v296
        %v307 = vunpack.c.l.s4 1934713408
        %v308 = vunpack.c.0.s8 %v307
        %v309 = vlaneseq
        %v310 = vshrl.u32 %v309, 7
        %v311 = vsub.s32 %v308, %v310
        %v312 = vrot.slane %v305, %v311
        %v313 = vcombine.low %v304, %v312
        %v314 = vcombine.low %v242, %v248
        %v316 = vunpack.c.l.s4 1983009808
        %v317 = vunpack.c.0.s8 %v316
        %v318 = vlaneseq
        %v319 = vshrl.u32 %v318, 7
        %v320 = vsub.s32 %v317, %v319
        %v321 = vrot.slane %v314, %v320
        %v322 = vcombine.low %v245, %v251
        %v324 = vunpack.c.l.s4 1983009808
        %v325 = vunpack.c.0.s8 %v324
        %v326 = vlaneseq
        %v327 = vshrl.u32 %v326, 7
        %v328 = vsub.s32 %v325, %v327
        %v329 = vrot.slane %v322, %v328
        %v330 = vcombine.low %v254, %v260
        %v332 = vunpack.c.l.s4 1983009808
        %v333 = vunpack.c.0.s8 %v332
        %v334 = vlaneseq
        %v335 = vshrl.u32 %v334, 7
        %v336 = vsub.s32 %v333, %v335
        %v337 = vrot.slane %v330, %v336
        %v338 = vcombine.low %v257, %v263
        %v340 = vunpack.c.l.s4 1983009808
        %v341 = vunpack.c.0.s8 %v340
        %v342 = vlaneseq
        %v343 = vshrl.u32 %v342, 7
        %v344 = vsub.s32 %v341, %v343
        %v345 = vrot.slane %v338, %v344
        %v346 = vcombine.low %v321, %v329
        %v348 = vunpack.c.l.s4 1934713408
        %v349 = vunpack.c.0.s8 %v348
        %v350 = vlaneseq
        %v351 = vshrl.u32 %v350, 7
        %v352 = vsub.s32 %v349, %v351
        %v353 = vrot.slane %v346, %v352
        %v354 = vcombine.low %v337, %v345
        %v356 = vunpack.c.l.s4 1934713408
        %v357 = vunpack.c.0.s8 %v356
        %v358 = vlaneseq
        %v359 = vshrl.u32 %v358, 7
        %v360 = vsub.s32 %v357, %v359
        %v361 = vrot.slane %v354, %v360
        %v362 = vcombine.low %v353, %v361
        %vm363 = vcmask 64512
        %v364 = vsel %vm363, %v313, -inf
        %365 = vmax.xlane.f32.xlu0 %v364
        %v366 = vpop.xlane.xlu0 %365
        %v367 = vsel %vm363, %v362, -inf
        %368 = vmax.xlane.f32.xlu0 %v367
        %v369 = vpop.xlane.xlu0 %368
        %v370 = vsub.f32 %v313, %v366
        %v371 = vsub.f32 %v362, %v369
        %v372 = vmul.f32 %v370, 1.442695
        %v373 = vpow.pop %v372
        %v374 = vmul.f32 %v371, 1.442695
        %v375 = vpow.pop %v374
        %v376 = vsel %vm363, %v373, 0.0
        %377 = vadd.xlane.f32.xlu0 %v376
        %v378 = vpop.xlane.xlu0 %377
        %v379 = vsel %vm363, %v375, 0.0
        %380 = vadd.xlane.f32.xlu0 %v379
        %v381 = vpop.xlane.xlu0 %380
        %v382 = vrcp.pop %v378
        %v383 = vrcp.pop %v381
        %v384 = vmul.f32 %v373, %v382
        %v385 = vmul.f32 %v375, %v383
        %v386 = vcombine.high %v384, 0.0
        %v388 = vunpack.c.l.s4 1983009808
        %v389 = vunpack.c.0.s8 %v388
        %v390 = vlaneseq
        %v391 = vshrl.u32 %v390, 7
        %v392 = vsub.s32 %v389, %v391
        %v393 = vrot.slane %v384, %v392
        %v395 = vunpack.c.l.s4 1983009808
        %v396 = vunpack.c.0.s8 %v395
        %v397 = vlaneseq
        %v398 = vshrl.u32 %v397, 7
        %v399 = vsub.s32 %v396, %v398
        %v400 = vrot.slane %v386, %v399
        %v401 = vcombine.high %v393, 0.0
        %v403 = vunpack.c.l.s4 1934713408
        %v404 = vunpack.c.0.s8 %v403
        %v405 = vlaneseq
        %v406 = vshrl.u32 %v405, 7
        %v407 = vsub.s32 %v404, %v406
        %v408 = vrot.slane %v393, %v407
        %v410 = vunpack.c.l.s4 1934713408
        %v411 = vunpack.c.0.s8 %v410
        %v412 = vlaneseq
        %v413 = vshrl.u32 %v412, 7
        %v414 = vsub.s32 %v411, %v413
        %v415 = vrot.slane %v401, %v414
        %v416 = vcombine.high %v400, 0.0
        %v418 = vunpack.c.l.s4 1934713408
        %v419 = vunpack.c.0.s8 %v418
        %v420 = vlaneseq
        %v421 = vshrl.u32 %v420, 7
        %v422 = vsub.s32 %v419, %v421
        %v423 = vrot.slane %v400, %v422
        %v425 = vunpack.c.l.s4 1934713408
        %v426 = vunpack.c.0.s8 %v425
        %v427 = vlaneseq
        %v428 = vshrl.u32 %v427, 7
        %v429 = vsub.s32 %v426, %v428
        %v430 = vrot.slane %v416, %v429
        %v431 = vcombine.high %v408, 0.0
        %v432 = vcombine.high %v415, 0.0
        %v433 = vcombine.high %v423, 0.0
        %v434 = vcombine.high %v430, 0.0
        %v435 = vcombine.high %v385, 0.0
        %v437 = vunpack.c.l.s4 1983009808
        %v438 = vunpack.c.0.s8 %v437
        %v439 = vlaneseq
        %v440 = vshrl.u32 %v439, 7
        %v441 = vsub.s32 %v438, %v440
        %v442 = vrot.slane %v385, %v441
        %v444 = vunpack.c.l.s4 1983009808
        %v445 = vunpack.c.0.s8 %v444
        %v446 = vlaneseq
        %v447 = vshrl.u32 %v446, 7
        %v448 = vsub.s32 %v445, %v447
        %v449 = vrot.slane %v435, %v448
        %v450 = vcombine.high %v442, 0.0
        %v452 = vunpack.c.l.s4 1934713408
        %v453 = vunpack.c.0.s8 %v452
        %v454 = vlaneseq
        %v455 = vshrl.u32 %v454, 7
        %v456 = vsub.s32 %v453, %v455
        %v457 = vrot.slane %v442, %v456
        %v459 = vunpack.c.l.s4 1934713408
        %v460 = vunpack.c.0.s8 %v459
        %v461 = vlaneseq
        %v462 = vshrl.u32 %v461, 7
        %v463 = vsub.s32 %v460, %v462
        %v464 = vrot.slane %v450, %v463
        %v465 = vcombine.high %v449, 0.0
        %v467 = vunpack.c.l.s4 1934713408
        %v468 = vunpack.c.0.s8 %v467
        %v469 = vlaneseq
        %v470 = vshrl.u32 %v469, 7
        %v471 = vsub.s32 %v468, %v470
        %v472 = vrot.slane %v449, %v471
        %v474 = vunpack.c.l.s4 1934713408
        %v475 = vunpack.c.0.s8 %v474
        %v476 = vlaneseq
        %v477 = vshrl.u32 %v476, 7
        %v478 = vsub.s32 %v475, %v477
        %v479 = vrot.slane %v465, %v478
        %v480 = vcombine.high %v457, 0.0
        %v481 = vcombine.high %v464, 0.0
        %v482 = vcombine.high %v472, 0.0
        %v483 = vcombine.high %v479, 0.0
        %485 = vrot.lane.b32.xlu0 %v431, 8
        %v486 = vpop.permute.xlu0 %485
        %489 = vrot.lane.b32.xlu0 %v415, 16
        %v490 = vpop.permute.xlu0 %489
        %493 = vrot.lane.b32.xlu0 %v432, 24
        %v494 = vpop.permute.xlu0 %493
        %497 = vrot.lane.b32.xlu0 %v423, 32
        %v498 = vpop.permute.xlu0 %497
        %501 = vrot.lane.b32.xlu0 %v433, 40
        %v502 = vpop.permute.xlu0 %501
        %505 = vrot.lane.b32.xlu0 %v430, 48
        %v506 = vpop.permute.xlu0 %505
        %509 = vrot.lane.b32.xlu0 %v434, 56
        %v510 = vpop.permute.xlu0 %509
        %513 = vrot.lane.b32.xlu0 %v457, 64
        %v514 = vpop.permute.xlu0 %513
        %517 = vrot.lane.b32.xlu0 %v480, 72
        %v518 = vpop.permute.xlu0 %517
        %521 = vrot.lane.b32.xlu0 %v464, 80
        %v522 = vpop.permute.xlu0 %521
        %525 = vrot.lane.b32.xlu0 %v481, 88
        %v526 = vpop.permute.xlu0 %525
        %529 = vrot.lane.b32.xlu0 %v472, 96
        %v530 = vpop.permute.xlu0 %529
        %533 = vrot.lane.b32.xlu0 %v482, 104
        %v534 = vpop.permute.xlu0 %533
        %537 = vrot.lane.b32.xlu0 %v479, 112
        %v538 = vpop.permute.xlu0 %537
        %541 = vrot.lane.b32.xlu0 %v483, 120
        %v542 = vpop.permute.xlu0 %541
        %v544 = vsel %vm363, %v408, %v486
        %vm545 = vcmask 130048
        %v546 = vsel %vm545, %v544, %v490
        %vm547 = vcmask 195584
        %v548 = vsel %vm547, %v546, %v494
        %vm549 = vcmask 261120
        %v550 = vsel %vm549, %v548, %v498
        %vm551 = vcmask 326656
        %v552 = vsel %vm551, %v550, %v502
        %vm553 = vcmask 392192
        %v554 = vsel %vm553, %v552, %v506
        %vm555 = vcmask 457728
        %v556 = vsel %vm555, %v554, %v510
        %vm557 = vcmask 523264
        %v558 = vsel %vm557, %v556, %v514
        %vm559 = vcmask 588800
        %v560 = vsel %vm559, %v558, %v518
        %vm561 = vcmask 654336
        %v562 = vsel %vm561, %v560, %v522
        %vm563 = vcmask 719872
        %v564 = vsel %vm563, %v562, %v526
        %vm565 = vcmask 785408
        %v566 = vsel %vm565, %v564, %v530
        %vm567 = vcmask 850944
        %v568 = vsel %vm567, %v566, %v534
        %vm569 = vcmask 916480
        %v570 = vsel %vm569, %v568, %v538
        %vm571 = vcmask 982016
        %v572 = vsel %vm571, %v570, %v542
        %v573 = vlaneseq
        %v574 = vshrl.u32 %v573, 7
        %v575 = vsub.s32 0, %v574
        %v576 = vrot.slane %v572, %v575
        %v577 = vmul.f32 %v172, %v576
        %578 = vrot.lane.b32.xlu0 %v577, 8
        %v579 = vpop.permute.xlu0 %578
        %v580 = vadd.f32 %v577, %v579
        %581 = vrot.lane.b32.xlu0 %v580, 16
        %v582 = vpop.permute.xlu0 %581
        %v583 = vadd.f32 %v580, %v582
        %584 = vrot.lane.b32.xlu0 %v583, 32
        %v585 = vpop.permute.xlu0 %584
        %v586 = vadd.f32 %v583, %v585
        %587 = vrot.lane.b32.xlu0 %v586, 64
        %v588 = vpop.permute.xlu0 %587
        %v589 = vadd.f32 %v586, %v588
        %v590 = vadd.f32 %v589, %v173
        %v591 = vrot.slane %v589, 4
        %v592 = vadd.f32 %v589, %v591
        %v593 = vrot.slane %v592, 2
        %v594 = vadd.f32 %v592, %v593
        %v595 = vrot.slane %v594, 1
        %v596 = vadd.f32 %v594, %v595
        %vm597 = vcmp.eq.f32.partialorder %v596, 0.0
        %v598 = vsel %vm597, 1, 0
        %vm599 = vcmp.eq.s32.totalorder %v598, 1
        %v600 = vsel %vm599, 0.0, %v590
        %v601 = vmul.f32 %v600, %v600
        %v602 = vrot.slane %v601, 4
        %v603 = vadd.f32 %v601, %v602
        %v604 = vrot.slane %v603, 2
        %v605 = vadd.f32 %v603, %v604
        %v606 = vrot.slane %v605, 1
        %v607 = vadd.f32 %v605, %v606
        %v608 = vadd.f32 %v607, 1.0
        %v609 = vrcp.pop %v608
        %v610 = vmul.f32 %v607, %v609
        %v611 = vadd.f32 %v607, 1e-08
        %v612 = vrsqrt.pop %v611
        %v613 = vmul.f32 %v610, %v612
        %v614 = vmul.f32 %v613, %v600
        %v615 = vmul.f32 %v172, %v614
        %v616 = vrot.slane %v615, 4
        %v617 = vadd.f32 %v615, %v616
        %v618 = vrot.slane %v617, 2
        %v619 = vadd.f32 %v617, %v618
        %v620 = vrot.slane %v619, 1
        %v621 = vadd.f32 %v619, %v620
        %v622 = vadd.f32 %v218, %v621
        %624 = vrot.lane.b32.xlu0 %v622, 120
        %v625 = vpop.permute.xlu0 %624
        %627 = vrot.lane.b32.xlu0 %v622, 112
        %v628 = vpop.permute.xlu0 %627
        %630 = vrot.lane.b32.xlu0 %v622, 104
        %v631 = vpop.permute.xlu0 %630
        %633 = vrot.lane.b32.xlu0 %v622, 96
        %v634 = vpop.permute.xlu0 %633
        %636 = vrot.lane.b32.xlu0 %v622, 88
        %v637 = vpop.permute.xlu0 %636
        %639 = vrot.lane.b32.xlu0 %v622, 80
        %v640 = vpop.permute.xlu0 %639
        %642 = vrot.lane.b32.xlu0 %v622, 72
        %v643 = vpop.permute.xlu0 %642
        %645 = vrot.lane.b32.xlu0 %v622, 64
        %v646 = vpop.permute.xlu0 %645
        %648 = vrot.lane.b32.xlu0 %v622, 56
        %v649 = vpop.permute.xlu0 %648
        %651 = vrot.lane.b32.xlu0 %v622, 48
        %v652 = vpop.permute.xlu0 %651
        %654 = vrot.lane.b32.xlu0 %v622, 40
        %v655 = vpop.permute.xlu0 %654
        %657 = vrot.lane.b32.xlu0 %v622, 32
        %v658 = vpop.permute.xlu0 %657
        %660 = vrot.lane.b32.xlu0 %v622, 24
        %v661 = vpop.permute.xlu0 %660
        %663 = vrot.lane.b32.xlu0 %v622, 16
        %v664 = vpop.permute.xlu0 %663
        %666 = vrot.lane.b32.xlu0 %v622, 8
        %v667 = vpop.permute.xlu0 %666
        %v669 = vcombine.low %v622, %v628
        %v671 = vunpack.c.l.s4 1983009808
        %v672 = vunpack.c.0.s8 %v671
        %v673 = vlaneseq
        %v674 = vshrl.u32 %v673, 7
        %v675 = vsub.s32 %v672, %v674
        %v676 = vrot.slane %v669, %v675
        %v677 = vcombine.low %v625, %v631
        %v679 = vunpack.c.l.s4 1983009808
        %v680 = vunpack.c.0.s8 %v679
        %v681 = vlaneseq
        %v682 = vshrl.u32 %v681, 7
        %v683 = vsub.s32 %v680, %v682
        %v684 = vrot.slane %v677, %v683
        %v685 = vcombine.low %v634, %v640
        %v687 = vunpack.c.l.s4 1983009808
        %v688 = vunpack.c.0.s8 %v687
        %v689 = vlaneseq
        %v690 = vshrl.u32 %v689, 7
        %v691 = vsub.s32 %v688, %v690
        %v692 = vrot.slane %v685, %v691
        %v693 = vcombine.low %v637, %v643
        %v695 = vunpack.c.l.s4 1983009808
        %v696 = vunpack.c.0.s8 %v695
        %v697 = vlaneseq
        %v698 = vshrl.u32 %v697, 7
        %v699 = vsub.s32 %v696, %v698
        %v700 = vrot.slane %v693, %v699
        %v701 = vcombine.low %v676, %v684
        %v703 = vunpack.c.l.s4 1934713408
        %v704 = vunpack.c.0.s8 %v703
        %v705 = vlaneseq
        %v706 = vshrl.u32 %v705, 7
        %v707 = vsub.s32 %v704, %v706
        %v708 = vrot.slane %v701, %v707
        %v709 = vcombine.low %v692, %v700
        %v711 = vunpack.c.l.s4 1934713408
        %v712 = vunpack.c.0.s8 %v711
        %v713 = vlaneseq
        %v714 = vshrl.u32 %v713, 7
        %v715 = vsub.s32 %v712, %v714
        %v716 = vrot.slane %v709, %v715
        %v717 = vcombine.low %v708, %v716
        %v718 = vcombine.low %v646, %v652
        %v720 = vunpack.c.l.s4 1983009808
        %v721 = vunpack.c.0.s8 %v720
        %v722 = vlaneseq
        %v723 = vshrl.u32 %v722, 7
        %v724 = vsub.s32 %v721, %v723
        %v725 = vrot.slane %v718, %v724
        %v726 = vcombine.low %v649, %v655
        %v728 = vunpack.c.l.s4 1983009808
        %v729 = vunpack.c.0.s8 %v728
        %v730 = vlaneseq
        %v731 = vshrl.u32 %v730, 7
        %v732 = vsub.s32 %v729, %v731
        %v733 = vrot.slane %v726, %v732
        %v734 = vcombine.low %v658, %v664
        %v736 = vunpack.c.l.s4 1983009808
        %v737 = vunpack.c.0.s8 %v736
        %v738 = vlaneseq
        %v739 = vshrl.u32 %v738, 7
        %v740 = vsub.s32 %v737, %v739
        %v741 = vrot.slane %v734, %v740
        %v742 = vcombine.low %v661, %v667
        %v744 = vunpack.c.l.s4 1983009808
        %v745 = vunpack.c.0.s8 %v744
        %v746 = vlaneseq
        %v747 = vshrl.u32 %v746, 7
        %v748 = vsub.s32 %v745, %v747
        %v749 = vrot.slane %v742, %v748
        %v750 = vcombine.low %v725, %v733
        %v752 = vunpack.c.l.s4 1934713408
        %v753 = vunpack.c.0.s8 %v752
        %v754 = vlaneseq
        %v755 = vshrl.u32 %v754, 7
        %v756 = vsub.s32 %v753, %v755
        %v757 = vrot.slane %v750, %v756
        %v758 = vcombine.low %v741, %v749
        %v760 = vunpack.c.l.s4 1934713408
        %v761 = vunpack.c.0.s8 %v760
        %v762 = vlaneseq
        %v763 = vshrl.u32 %v762, 7
        %v764 = vsub.s32 %v761, %v763
        %v765 = vrot.slane %v758, %v764
        %v766 = vcombine.low %v757, %v765
        %v767 = vsel %vm363, %v717, -inf
        %768 = vmax.xlane.f32.xlu0 %v767
        %v769 = vpop.xlane.xlu0 %768
        %v770 = vsel %vm363, %v766, -inf
        %771 = vmax.xlane.f32.xlu0 %v770
        %v772 = vpop.xlane.xlu0 %771
        %v773 = vsub.f32 %v717, %v769
        %v774 = vsub.f32 %v766, %v772
        %v775 = vmul.f32 %v773, 1.442695
        %v776 = vpow.pop %v775
        %v777 = vmul.f32 %v774, 1.442695
        %v778 = vpow.pop %v777
        %v779 = vsel %vm363, %v776, 0.0
        %780 = vadd.xlane.f32.xlu0 %v779
        %v781 = vpop.xlane.xlu0 %780
        %v782 = vsel %vm363, %v778, 0.0
        %783 = vadd.xlane.f32.xlu0 %v782
        %v784 = vpop.xlane.xlu0 %783
        %v785 = vrcp.pop %v781
        %v786 = vrcp.pop %v784
        %v787 = vmul.f32 %v776, %v785
        %v788 = vmul.f32 %v778, %v786
        %v789 = vcombine.high %v787, 0.0
        %v791 = vunpack.c.l.s4 1983009808
        %v792 = vunpack.c.0.s8 %v791
        %v793 = vlaneseq
        %v794 = vshrl.u32 %v793, 7
        %v795 = vsub.s32 %v792, %v794
        %v796 = vrot.slane %v787, %v795
        %v798 = vunpack.c.l.s4 1983009808
        %v799 = vunpack.c.0.s8 %v798
        %v800 = vlaneseq
        %v801 = vshrl.u32 %v800, 7
        %v802 = vsub.s32 %v799, %v801
        %v803 = vrot.slane %v789, %v802
        %v804 = vcombine.high %v796, 0.0
        %v806 = vunpack.c.l.s4 1934713408
        %v807 = vunpack.c.0.s8 %v806
        %v808 = vlaneseq
        %v809 = vshrl.u32 %v808, 7
        %v810 = vsub.s32 %v807, %v809
        %v811 = vrot.slane %v796, %v810
        %v813 = vunpack.c.l.s4 1934713408
        %v814 = vunpack.c.0.s8 %v813
        %v815 = vlaneseq
        %v816 = vshrl.u32 %v815, 7
        %v817 = vsub.s32 %v814, %v816
        %v818 = vrot.slane %v804, %v817
        %v819 = vcombine.high %v803, 0.0
        %v821 = vunpack.c.l.s4 1934713408
        %v822 = vunpack.c.0.s8 %v821
        %v823 = vlaneseq
        %v824 = vshrl.u32 %v823, 7
        %v825 = vsub.s32 %v822, %v824
        %v826 = vrot.slane %v803, %v825
        %v828 = vunpack.c.l.s4 1934713408
        %v829 = vunpack.c.0.s8 %v828
        %v830 = vlaneseq
        %v831 = vshrl.u32 %v830, 7
        %v832 = vsub.s32 %v829, %v831
        %v833 = vrot.slane %v819, %v832
        %v834 = vcombine.high %v811, 0.0
        %v835 = vcombine.high %v818, 0.0
        %v836 = vcombine.high %v826, 0.0
        %v837 = vcombine.high %v833, 0.0
        %v838 = vcombine.high %v788, 0.0
        %v840 = vunpack.c.l.s4 1983009808
        %v841 = vunpack.c.0.s8 %v840
        %v842 = vlaneseq
        %v843 = vshrl.u32 %v842, 7
        %v844 = vsub.s32 %v841, %v843
        %v845 = vrot.slane %v788, %v844
        %v847 = vunpack.c.l.s4 1983009808
        %v848 = vunpack.c.0.s8 %v847
        %v849 = vlaneseq
        %v850 = vshrl.u32 %v849, 7
        %v851 = vsub.s32 %v848, %v850
        %v852 = vrot.slane %v838, %v851
        %v853 = vcombine.high %v845, 0.0
        %v855 = vunpack.c.l.s4 1934713408
        %v856 = vunpack.c.0.s8 %v855
        %v857 = vlaneseq
        %v858 = vshrl.u32 %v857, 7
        %v859 = vsub.s32 %v856, %v858
        %v860 = vrot.slane %v845, %v859
        %v862 = vunpack.c.l.s4 1934713408
        %v863 = vunpack.c.0.s8 %v862
        %v864 = vlaneseq
        %v865 = vshrl.u32 %v864, 7
        %v866 = vsub.s32 %v863, %v865
        %v867 = vrot.slane %v853, %v866
        %v868 = vcombine.high %v852, 0.0
        %v870 = vunpack.c.l.s4 1934713408
        %v871 = vunpack.c.0.s8 %v870
        %v872 = vlaneseq
        %v873 = vshrl.u32 %v872, 7
        %v874 = vsub.s32 %v871, %v873
        %v875 = vrot.slane %v852, %v874
        %v877 = vunpack.c.l.s4 1934713408
        %v878 = vunpack.c.0.s8 %v877
        %v879 = vlaneseq
        %v880 = vshrl.u32 %v879, 7
        %v881 = vsub.s32 %v878, %v880
        %v882 = vrot.slane %v868, %v881
        %v883 = vcombine.high %v860, 0.0
        %v884 = vcombine.high %v867, 0.0
        %v885 = vcombine.high %v875, 0.0
        %v886 = vcombine.high %v882, 0.0
        %888 = vrot.lane.b32.xlu0 %v834, 8
        %v889 = vpop.permute.xlu0 %888
        %892 = vrot.lane.b32.xlu0 %v818, 16
        %v893 = vpop.permute.xlu0 %892
        %896 = vrot.lane.b32.xlu0 %v835, 24
        %v897 = vpop.permute.xlu0 %896
        %900 = vrot.lane.b32.xlu0 %v826, 32
        %v901 = vpop.permute.xlu0 %900
        %904 = vrot.lane.b32.xlu0 %v836, 40
        %v905 = vpop.permute.xlu0 %904
        %908 = vrot.lane.b32.xlu0 %v833, 48
        %v909 = vpop.permute.xlu0 %908
        %912 = vrot.lane.b32.xlu0 %v837, 56
        %v913 = vpop.permute.xlu0 %912
        %916 = vrot.lane.b32.xlu0 %v860, 64
        %v917 = vpop.permute.xlu0 %916
        %920 = vrot.lane.b32.xlu0 %v883, 72
        %v921 = vpop.permute.xlu0 %920
        %924 = vrot.lane.b32.xlu0 %v867, 80
        %v925 = vpop.permute.xlu0 %924
        %928 = vrot.lane.b32.xlu0 %v884, 88
        %v929 = vpop.permute.xlu0 %928
        %932 = vrot.lane.b32.xlu0 %v875, 96
        %v933 = vpop.permute.xlu0 %932
        %936 = vrot.lane.b32.xlu0 %v885, 104
        %v937 = vpop.permute.xlu0 %936
        %940 = vrot.lane.b32.xlu0 %v882, 112
        %v941 = vpop.permute.xlu0 %940
        %944 = vrot.lane.b32.xlu0 %v886, 120
        %v945 = vpop.permute.xlu0 %944
        %v947 = vsel %vm363, %v811, %v889
        %v948 = vsel %vm545, %v947, %v893
        %v949 = vsel %vm547, %v948, %v897
        %v950 = vsel %vm549, %v949, %v901
        %v951 = vsel %vm551, %v950, %v905
        %v952 = vsel %vm553, %v951, %v909
        %v953 = vsel %vm555, %v952, %v913
        %v954 = vsel %vm557, %v953, %v917
        %v955 = vsel %vm559, %v954, %v921
        %v956 = vsel %vm561, %v955, %v925
        %v957 = vsel %vm563, %v956, %v929
        %v958 = vsel %vm565, %v957, %v933
        %v959 = vsel %vm567, %v958, %v937
        %v960 = vsel %vm569, %v959, %v941
        %v961 = vsel %vm571, %v960, %v945
        %v962 = vlaneseq
        %v963 = vshrl.u32 %v962, 7
        %v964 = vsub.s32 0, %v963
        %v965 = vrot.slane %v961, %v964
        %v966 = vmul.f32 %v172, %v965
        %967 = vrot.lane.b32.xlu0 %v966, 8
        %v968 = vpop.permute.xlu0 %967
        %v969 = vadd.f32 %v966, %v968
        %970 = vrot.lane.b32.xlu0 %v969, 16
        %v971 = vpop.permute.xlu0 %970
        %v972 = vadd.f32 %v969, %v971
        %973 = vrot.lane.b32.xlu0 %v972, 32
        %v974 = vpop.permute.xlu0 %973
        %v975 = vadd.f32 %v972, %v974
        %976 = vrot.lane.b32.xlu0 %v975, 64
        %v977 = vpop.permute.xlu0 %976
        %v978 = vadd.f32 %v975, %v977
        %v979 = vadd.f32 %v978, %v173
        %v980 = vrot.slane %v978, 4
        %v981 = vadd.f32 %v978, %v980
        %v982 = vrot.slane %v981, 2
        %v983 = vadd.f32 %v981, %v982
        %v984 = vrot.slane %v983, 1
        %v985 = vadd.f32 %v983, %v984
        %vm986 = vcmp.eq.f32.partialorder %v985, 0.0
        %v987 = vsel %vm986, 1, 0
        %vm988 = vcmp.eq.s32.totalorder %v987, 1
        %v989 = vsel %vm988, 0.0, %v979
        %v990 = vmul.f32 %v989, %v989
        %v991 = vrot.slane %v990, 4
        %v992 = vadd.f32 %v990, %v991
        %v993 = vrot.slane %v992, 2
        %v994 = vadd.f32 %v992, %v993
        %v995 = vrot.slane %v994, 1
        %v996 = vadd.f32 %v994, %v995
        %v997 = vadd.f32 %v996, 1.0
        %v998 = vrcp.pop %v997
        %v999 = vmul.f32 %v996, %v998
        %v1000 = vadd.f32 %v996, 1e-08
        %v1001 = vrsqrt.pop %v1000
        %v1002 = vmul.f32 %v999, %v1001
        %v1003 = vmul.f32 %v1002, %v989
        %1004 = vst [vmem:[%s171] sm:$0xff] %v1003
        %s1005 = sand.u32 %s75, 1
        %s1006 = scalar_lea.sflag [#allocation4], %s1005
        %s1007 = sand.u32 %s75, 1
        %s1008 = smul.addr %s1007, 8
        %s1009 = scalar_lea.vmem [#allocation7], %s1008
        // Predicated region
        $region37: #{tpu_custom_call.1} parent=27 // pred_check
          %p1010 = pneg %p85
        $region38: #{tpu_custom_call.1} parent=27 // pred_check_branch
          %1012 = sbr.rel (%p1010) target = $region40
        $region39: #{tpu_custom_call.1} parent=27 // pred_region
          %s1014 = ssub.s32 128, 128
          %1015 = vsyncadd %s1006, %s1014
          %s1016 = smul.addr %s20, 128
          %s1017 = scalar_lea.hbm %s2, %s1016
          %s1019 = sshll.u32 %s1009, 4
          %s1020 = int_to_ptr.vmem [resolvable:$true] %s1019
          %1022 = dma.vmem_to_hbm [thread:$0]  %s1020, 128, %s1017, %s1006
        $region40: #{tpu_custom_call.1} parent=27 // pred_fallthru
          _
      $region28: #{tpu_custom_call.1} parent=5 // pred_fallthru
        _
      %p1023 = scmp.le.s32.totalorder 2, %s15
      // Predicated region
      $region41: #{tpu_custom_call.1} parent=5 // pred_check
        %p1024 = pneg %p1023
      $region42: #{tpu_custom_call.1} parent=5 // pred_check_branch
        %1026 = sbr.rel (%p1024) target = $region44
      $region43: #{tpu_custom_call.1} parent=5 // pred_region
        %s1027 = ssub.s32 %s15, 2
        // Predicated region
        $region45: #{tpu_custom_call.1} parent=43 // pred_check
          %p1028 = pneg %p91
        $region46: #{tpu_custom_call.1} parent=43 // pred_check_branch
          %1030 = sbr.rel (%p1028) target = $region48
        $region47: #{tpu_custom_call.1} parent=43 // pred_region
          %s1031 = sand.u32 %s76, 1
          %s1032 = scalar_lea.sflag [#allocation4], %s1031
          %s1033 = sand.u32 %s76, 1
          %s1034 = smul.addr %s1033, 8
          %s1035 = scalar_lea.vmem [#allocation7], %s1034
          %1036 = dma.done %s1032, 128
        $region48: #{tpu_custom_call.1} parent=43 // pred_fallthru
          _
      $region44: #{tpu_custom_call.1} parent=5 // pred_fallthru
        _
    $region6: #{tpu_custom_call.1} parent=1 // loop_footer
      %s19 = sadd.s32 1, %s15
    $region7: #{tpu_custom_call.1} parent=1 // loop_footer_branch
      %14 = sbr.rel target = $region3
    $region8: #{tpu_custom_call.1} parent=1 // loop_exit
      _
    %1037 = vsyncpa [#allocation3], 1
    %s1038 = scalar_lea.sflag [#allocation3], 1
    %1039 = vsyncpa %s1038, 1
    %1040 = vsyncpa [#allocation6], 1
    %1041 = vsyncpa [#allocation4], 1
    %s1042 = scalar_lea.sflag [#allocation4], 1
    %1043 = vsyncpa %s1042, 1

</llo_original>
